<compile_context>
chip_gen: v7x
topology: tpu7x:2x2x1
jax: 0.10.0
libtpu: 0.0.40
codegen_flags: <defaults>
</compile_context>

<pallas_src>
import functools

import jax
import jax.numpy as jnp
from jax.experimental import pallas as pl
from jax.experimental.pallas import tpu as pltpu


def _clip_embedding_resident_kernel(ids_ref, tok_ref, pos_ref, out_ref, *,
                                    rows, t_pad):
    """Fast path: token table is VMEM-resident; gather via dynamic VMEM reads."""
    g = pl.program_id(0)
    base = g * (rows * t_pad)
    pos = pos_ref[...]                                     # (T_pad, E), resident
    for r in range(rows):
        pieces = []
        for t in range(t_pad):
            tid = ids_ref[base + r * t_pad + t]            # scalar id from SMEM
            pieces.append(tok_ref[pl.ds(tid, 1), :])       # (1, E) dynamic read
        row_block = jnp.concatenate(pieces, axis=0)        # (T_pad, E)
        out_ref[r] = (row_block + pos).astype(out_ref.dtype)


def _clip_embedding_hbm_kernel(ids_ref, tok_hbm, pos_ref, out_ref, tok_buf, sems,
                               *, rows, t_pad, nslots, n_blocks):
    """Fallback: token table stays in HBM; multi-buffered manual row-gather DMAs."""
    g = pl.program_id(0)
    tb = rows * t_pad

    def start_gather(step, slot):
        base = step * tb
        for r in range(rows):
            for t in range(t_pad):
                tid = ids_ref[base + r * t_pad + t]
                pltpu.make_async_copy(
                    tok_hbm.at[tid], tok_buf.at[slot, r, t], sems.at[slot]
                ).start()

    # Prime the pipeline: issue the first (nslots - 1) blocks on step 0.
    @pl.when(g == 0)
    def _():
        for s in range(min(nslots - 1, n_blocks)):
            start_gather(s, s % nslots)

    # Keep nslots blocks in flight: prefetch block g + nslots - 1 into the slot
    # freed last step.
    @pl.when(g + nslots - 1 < n_blocks)
    def _():
        start_gather(g + nslots - 1, (g + nslots - 1) % nslots)

    # Scalar/SMEM work and the resident pos load are issued BEFORE the DMA wait
    # (a wait breaks SMEM store->load forwarding).
    pos = pos_ref[...]                                     # (T_pad, E)

    slot = g % nslots
    # Single aggregate wait: the tb row copies of this block all signaled
    # sems[slot] (tb * E * itemsize bytes total); decrement by the same amount
    # with one (rows, T_pad, E)-sized descriptor.
    pltpu.make_async_copy(tok_buf.at[slot], tok_buf.at[slot], sems.at[slot]).wait()

    out_ref[...] = (tok_buf[slot] + pos[None, :, :]).astype(out_ref.dtype)


def clip_embedding(ids, token_table, pos_table, *, rows_per_block=None, nslots=4,
                   resident_table_bytes=16 * 1024 * 1024):
    """CLIPEmbedding forward: token_table[ids] + pos_table.

    ids: (B, T) int, token_table: (V, E), pos_table: (T, E) -> (B, T, E).
    """
    B, T = ids.shape
    V, E = token_table.shape
    assert pos_table.shape == (T, E)
    dtype = token_table.dtype
    itemsize = jnp.dtype(dtype).itemsize

    # Clamp untrusted ids: an id >= V would be an OOB gather.  (PyTorch raises;
    # we clamp -- documented behavioral difference.)
    ids = jnp.clip(ids.astype(jnp.int32), 0, V - 1)

    # Pad the token axis to the dtype's sublane-packing multiple so every tile is
    # full width: f32 -> 8, bf16 -> 16, int8/fp8 -> 32.
    sub = max(8, 32 // itemsize)
    T_pad = ((T + sub - 1) // sub) * sub
    if T_pad != T:
        ids = jnp.pad(ids, ((0, 0), (0, T_pad - T)))             # pad tokens -> row 0
        pos_table = jnp.pad(pos_table, ((0, T_pad - T), (0, 0)))

    # Whole batch rows per grid step; target a few hundred tokens per block.
    if rows_per_block is None:
        rows_per_block = max(1, 256 // T_pad)
    rows_per_block = max(1, min(rows_per_block, B))
    while B % rows_per_block:
        rows_per_block -= 1
    n_blocks = B // rows_per_block
    tb = rows_per_block * T_pad

    ids_flat = ids.reshape(B * T_pad)
    # TODO(synk): the whole flat ids array is scalar-prefetched into SMEM (pads to
    # next_pow2(4*B*T_pad) bytes); for very large B*T chunk the ids per block
    # instead of prefetching them all.

    resident = V * E * itemsize <= resident_table_bytes
    nslots = max(2, min(nslots, n_blocks))

    # VMEM budget (pos + output double-buffer + table copy or gather scratch).
    out_block_bytes = tb * E * itemsize
    pos_bytes = T_pad * E * itemsize
    vmem_needed = 2 * pos_bytes + 2 * out_block_bytes
    if resident:
        vmem_needed += 2 * V * E * itemsize
    else:
        vmem_needed += nslots * tb * E * itemsize
    vmem_limit = int(min(max(2 * vmem_needed, 32 << 20), 64 << 20))

    cost = pl.CostEstimate(
        flops=B * T_pad * E,
        transcendentals=0,
        bytes_accessed=(2 * B * T_pad * E * itemsize     # gather read + output write
                        + T_pad * E * itemsize           # pos table
                        + B * T_pad * 4))                # ids

    if resident:
        kernel = functools.partial(
            _clip_embedding_resident_kernel, rows=rows_per_block, t_pad=T_pad)
        grid_spec = pltpu.PrefetchScalarGridSpec(
            num_scalar_prefetch=1,
            grid=(n_blocks,),
            in_specs=[
                pl.BlockSpec((V, E), lambda g, ids: (0, 0)),       # VMEM-resident table
                pl.BlockSpec((T_pad, E), lambda g, ids: (0, 0)),   # resident pos table
            ],
            out_specs=pl.BlockSpec((rows_per_block, T_pad, E),
                                   lambda g, ids: (g, 0, 0)),
        )
        dim_sem = ("parallel",)   # no cross-step state -> megacore-safe
    else:
        kernel = functools.partial(
            _clip_embedding_hbm_kernel, rows=rows_per_block, t_pad=T_pad,
            nslots=nslots, n_blocks=n_blocks)
        grid_spec = pltpu.PrefetchScalarGridSpec(
            num_scalar_prefetch=1,
            grid=(n_blocks,),
            in_specs=[
                pl.BlockSpec(memory_space=pl.ANY),                 # table stays in HBM
                pl.BlockSpec((T_pad, E), lambda g, ids: (0, 0)),   # resident pos table
            ],
            out_specs=pl.BlockSpec((rows_per_block, T_pad, E),
                                   lambda g, ids: (g, 0, 0)),
            scratch_shapes=[
                pltpu.VMEM((nslots, rows_per_block, T_pad, E), dtype),
                pltpu.SemaphoreType.DMA((nslots,)),
            ],
        )
        dim_sem = ("arbitrary",)  # manual prefetch assumes sequential grid

    out = pl.pallas_call(
        kernel,
        out_shape=jax.ShapeDtypeStruct((B, T_pad, E), dtype),
        grid_spec=grid_spec,
        compiler_params=pltpu.CompilerParams(
            dimension_semantics=dim_sem,
            vmem_limit_bytes=vmem_limit),
        cost_estimate=cost,
    )(ids_flat, token_table, pos_table)

    return out[:, :T, :] if T_pad != T else out


if __name__ == "__main__":
    vocab_size, embedding_size, num_tokens, batch = 64, 128, 8, 2

    key = jax.random.PRNGKey(0)
    k_tok, k_pos, k_ids = jax.random.split(key, 3)

    # nn.Embedding weight ~ N(0, 1); shape (vocab_size, embedding_size).
    token_table = jax.random.normal(
        k_tok, (vocab_size, embedding_size), dtype=jnp.float32)
    # PyTorch init zeros position_embedding; use random values so the add path
    # is actually exercised (forward semantics identical).
    pos_table = jax.random.normal(
        k_pos, (num_tokens, embedding_size), dtype=jnp.float32)
    ids = jax.random.randint(
        k_ids, (batch, num_tokens), 0, vocab_size, dtype=jnp.int32)

    # Pure-JAX reference: token_embedding(x) + position_embedding.
    ref = token_table[ids] + pos_table[None, :, :]

    # Fast path: VMEM-resident token table.
    out = jax.block_until_ready(clip_embedding(ids, token_table, pos_table))
    assert out.shape == (batch, num_tokens, embedding_size)
    assert out.dtype == jnp.float32
    assert jnp.allclose(out, ref, atol=1e-6, rtol=1e-6)

    # Fallback path: force the HBM manual-gather pipeline (used for large tables).
    out_hbm = jax.block_until_ready(
        clip_embedding(ids, token_table, pos_table, resident_table_bytes=0))
    assert jnp.allclose(out_hbm, ref, atol=1e-6, rtol=1e-6)

    print("KERNEL_OK")
</pallas_src>

<mosaic_0001>
module attributes {stable_mosaic.version = 11 : i64} {
  func.func @_clip_embedding_resident_kernel(%arg0: i32, %arg1: memref<16xi32, #tpu.memory_space<smem>>, %arg2: memref<64x128xf32, #tpu.memory_space<vmem>>, %arg3: memref<8x128xf32, #tpu.memory_space<vmem>>, %arg4: memref<2x8x128xf32, #tpu.memory_space<vmem>>) attributes {dimension_semantics = [#tpu.dimension_semantics<parallel>], iteration_bounds = array<i64: 1>, scalar_prefetch = 1 : i64, scratch_operands = 0 : i64, tpu.core_type = #tpu.core_type<tc>, window_params = [{pipeline_mode = #tpu.pipeline_mode<synchronous>, transform_indices = @transform_0, window_bounds = array<i64: 64, 128>}, {pipeline_mode = #tpu.pipeline_mode<synchronous>, transform_indices = @transform_1, window_bounds = array<i64: 8, 128>}, {transform_indices = @transform_2, window_bounds = array<i64: 2, 8, 128>}]} {
    %c16_i32 = arith.constant 16 : i32
    %0 = arith.muli %arg0, %c16_i32 : i32
    %c0 = arith.constant 0 : index
    %c0_0 = arith.constant 0 : index
    %1 = vector.load %arg3[%c0, %c0_0] : memref<8x128xf32, #tpu.memory_space<vmem>>, vector<8x128xf32>
    %c0_i32 = arith.constant 0 : i32
    %2 = arith.addi %0, %c0_i32 : i32
    %c0_i32_1 = arith.constant 0 : i32
    %3 = arith.addi %2, %c0_i32_1 : i32
    %4 = arith.index_cast %3 : i32 to index
    %5 = memref.load %arg1[%4] : memref<16xi32, #tpu.memory_space<smem>>
    %6 = arith.index_cast %5 : i32 to index
    %c0_2 = arith.constant 0 : index
    %7 = vector.load %arg2[%6, %c0_2] : memref<64x128xf32, #tpu.memory_space<vmem>>, vector<1x128xf32>
    %c0_i32_3 = arith.constant 0 : i32
    %8 = arith.addi %0, %c0_i32_3 : i32
    %c1_i32 = arith.constant 1 : i32
    %9 = arith.addi %8, %c1_i32 : i32
    %10 = arith.index_cast %9 : i32 to index
    %11 = memref.load %arg1[%10] : memref<16xi32, #tpu.memory_space<smem>>
    %12 = arith.index_cast %11 : i32 to index
    %c0_4 = arith.constant 0 : index
    %13 = vector.load %arg2[%12, %c0_4] : memref<64x128xf32, #tpu.memory_space<vmem>>, vector<1x128xf32>
    %c0_i32_5 = arith.constant 0 : i32
    %14 = arith.addi %0, %c0_i32_5 : i32
    %c2_i32 = arith.constant 2 : i32
    %15 = arith.addi %14, %c2_i32 : i32
    %16 = arith.index_cast %15 : i32 to index
    %17 = memref.load %arg1[%16] : memref<16xi32, #tpu.memory_space<smem>>
    %18 = arith.index_cast %17 : i32 to index
    %c0_6 = arith.constant 0 : index
    %19 = vector.load %arg2[%18, %c0_6] : memref<64x128xf32, #tpu.memory_space<vmem>>, vector<1x128xf32>
    %c0_i32_7 = arith.constant 0 : i32
    %20 = arith.addi %0, %c0_i32_7 : i32
    %c3_i32 = arith.constant 3 : i32
    %21 = arith.addi %20, %c3_i32 : i32
    %22 = arith.index_cast %21 : i32 to index
    %23 = memref.load %arg1[%22] : memref<16xi32, #tpu.memory_space<smem>>
    %24 = arith.index_cast %23 : i32 to index
    %c0_8 = arith.constant 0 : index
    %25 = vector.load %arg2[%24, %c0_8] : memref<64x128xf32, #tpu.memory_space<vmem>>, vector<1x128xf32>
    %c0_i32_9 = arith.constant 0 : i32
    %26 = arith.addi %0, %c0_i32_9 : i32
    %c4_i32 = arith.constant 4 : i32
    %27 = arith.addi %26, %c4_i32 : i32
    %28 = arith.index_cast %27 : i32 to index
    %29 = memref.load %arg1[%28] : memref<16xi32, #tpu.memory_space<smem>>
    %30 = arith.index_cast %29 : i32 to index
    %c0_10 = arith.constant 0 : index
    %31 = vector.load %arg2[%30, %c0_10] : memref<64x128xf32, #tpu.memory_space<vmem>>, vector<1x128xf32>
    %c0_i32_11 = arith.constant 0 : i32
    %32 = arith.addi %0, %c0_i32_11 : i32
    %c5_i32 = arith.constant 5 : i32
    %33 = arith.addi %32, %c5_i32 : i32
    %34 = arith.index_cast %33 : i32 to index
    %35 = memref.load %arg1[%34] : memref<16xi32, #tpu.memory_space<smem>>
    %36 = arith.index_cast %35 : i32 to index
    %c0_12 = arith.constant 0 : index
    %37 = vector.load %arg2[%36, %c0_12] : memref<64x128xf32, #tpu.memory_space<vmem>>, vector<1x128xf32>
    %c0_i32_13 = arith.constant 0 : i32
    %38 = arith.addi %0, %c0_i32_13 : i32
    %c6_i32 = arith.constant 6 : i32
    %39 = arith.addi %38, %c6_i32 : i32
    %40 = arith.index_cast %39 : i32 to index
    %41 = memref.load %arg1[%40] : memref<16xi32, #tpu.memory_space<smem>>
    %42 = arith.index_cast %41 : i32 to index
    %c0_14 = arith.constant 0 : index
    %43 = vector.load %arg2[%42, %c0_14] : memref<64x128xf32, #tpu.memory_space<vmem>>, vector<1x128xf32>
    %c0_i32_15 = arith.constant 0 : i32
    %44 = arith.addi %0, %c0_i32_15 : i32
    %c7_i32 = arith.constant 7 : i32
    %45 = arith.addi %44, %c7_i32 : i32
    %46 = arith.index_cast %45 : i32 to index
    %47 = memref.load %arg1[%46] : memref<16xi32, #tpu.memory_space<smem>>
    %48 = arith.index_cast %47 : i32 to index
    %c0_16 = arith.constant 0 : index
    %49 = vector.load %arg2[%48, %c0_16] : memref<64x128xf32, #tpu.memory_space<vmem>>, vector<1x128xf32>
    %50 = tpu.concatenate %7, %13, %19, %25, %31, %37, %43, %49 in 0 : vector<1x128xf32>, vector<1x128xf32>, vector<1x128xf32>, vector<1x128xf32>, vector<1x128xf32>, vector<1x128xf32>, vector<1x128xf32>, vector<1x128xf32> -> vector<8x128xf32>
    %51 = arith.addf %50, %1 : vector<8x128xf32>
    %c0_17 = arith.constant 0 : index
    %c0_18 = arith.constant 0 : index
    %c0_19 = arith.constant 0 : index
    %52 = vector.load %arg4[%c0_17, %c0_18, %c0_19] : memref<2x8x128xf32, #tpu.memory_space<vmem>>, vector<1x8x128xf32>
    %53 = vector.shape_cast %52 : vector<1x8x128xf32> to vector<8x128xf32>
    %54 = vector.shape_cast %51 : vector<8x128xf32> to vector<1x8x128xf32>
    tpu.vector_store %arg4[%c0_17, %c0_18, %c0_19], %54 {strides = array<i32>} : memref<2x8x128xf32, #tpu.memory_space<vmem>>, vector<1x8x128xf32>,
    %c8_i32 = arith.constant 8 : i32
    %55 = arith.addi %0, %c8_i32 : i32
    %c0_i32_20 = arith.constant 0 : i32
    %56 = arith.addi %55, %c0_i32_20 : i32
    %57 = arith.index_cast %56 : i32 to index
    %58 = memref.load %arg1[%57] : memref<16xi32, #tpu.memory_space<smem>>
    %59 = arith.index_cast %58 : i32 to index
    %c0_21 = arith.constant 0 : index
    %60 = vector.load %arg2[%59, %c0_21] : memref<64x128xf32, #tpu.memory_space<vmem>>, vector<1x128xf32>
    %c8_i32_22 = arith.constant 8 : i32
    %61 = arith.addi %0, %c8_i32_22 : i32
    %c1_i32_23 = arith.constant 1 : i32
    %62 = arith.addi %61, %c1_i32_23 : i32
    %63 = arith.index_cast %62 : i32 to index
    %64 = memref.load %arg1[%63] : memref<16xi32, #tpu.memory_space<smem>>
    %65 = arith.index_cast %64 : i32 to index
    %c0_24 = arith.constant 0 : index
    %66 = vector.load %arg2[%65, %c0_24] : memref<64x128xf32, #tpu.memory_space<vmem>>, vector<1x128xf32>
    %c8_i32_25 = arith.constant 8 : i32
    %67 = arith.addi %0, %c8_i32_25 : i32
    %c2_i32_26 = arith.constant 2 : i32
    %68 = arith.addi %67, %c2_i32_26 : i32
    %69 = arith.index_cast %68 : i32 to index
    %70 = memref.load %arg1[%69] : memref<16xi32, #tpu.memory_space<smem>>
    %71 = arith.index_cast %70 : i32 to index
    %c0_27 = arith.constant 0 : index
    %72 = vector.load %arg2[%71, %c0_27] : memref<64x128xf32, #tpu.memory_space<vmem>>, vector<1x128xf32>
    %c8_i32_28 = arith.constant 8 : i32
    %73 = arith.addi %0, %c8_i32_28 : i32
    %c3_i32_29 = arith.constant 3 : i32
    %74 = arith.addi %73, %c3_i32_29 : i32
    %75 = arith.index_cast %74 : i32 to index
    %76 = memref.load %arg1[%75] : memref<16xi32, #tpu.memory_space<smem>>
    %77 = arith.index_cast %76 : i32 to index
    %c0_30 = arith.constant 0 : index
    %78 = vector.load %arg2[%77, %c0_30] : memref<64x128xf32, #tpu.memory_space<vmem>>, vector<1x128xf32>
    %c8_i32_31 = arith.constant 8 : i32
    %79 = arith.addi %0, %c8_i32_31 : i32
    %c4_i32_32 = arith.constant 4 : i32
    %80 = arith.addi %79, %c4_i32_32 : i32
    %81 = arith.index_cast %80 : i32 to index
    %82 = memref.load %arg1[%81] : memref<16xi32, #tpu.memory_space<smem>>
    %83 = arith.index_cast %82 : i32 to index
    %c0_33 = arith.constant 0 : index
    %84 = vector.load %arg2[%83, %c0_33] : memref<64x128xf32, #tpu.memory_space<vmem>>, vector<1x128xf32>
    %c8_i32_34 = arith.constant 8 : i32
    %85 = arith.addi %0, %c8_i32_34 : i32
    %c5_i32_35 = arith.constant 5 : i32
    %86 = arith.addi %85, %c5_i32_35 : i32
    %87 = arith.index_cast %86 : i32 to index
    %88 = memref.load %arg1[%87] : memref<16xi32, #tpu.memory_space<smem>>
    %89 = arith.index_cast %88 : i32 to index
    %c0_36 = arith.constant 0 : index
    %90 = vector.load %arg2[%89, %c0_36] : memref<64x128xf32, #tpu.memory_space<vmem>>, vector<1x128xf32>
    %c8_i32_37 = arith.constant 8 : i32
    %91 = arith.addi %0, %c8_i32_37 : i32
    %c6_i32_38 = arith.constant 6 : i32
    %92 = arith.addi %91, %c6_i32_38 : i32
    %93 = arith.index_cast %92 : i32 to index
    %94 = memref.load %arg1[%93] : memref<16xi32, #tpu.memory_space<smem>>
    %95 = arith.index_cast %94 : i32 to index
    %c0_39 = arith.constant 0 : index
    %96 = vector.load %arg2[%95, %c0_39] : memref<64x128xf32, #tpu.memory_space<vmem>>, vector<1x128xf32>
    %c8_i32_40 = arith.constant 8 : i32
    %97 = arith.addi %0, %c8_i32_40 : i32
    %c7_i32_41 = arith.constant 7 : i32
    %98 = arith.addi %97, %c7_i32_41 : i32
    %99 = arith.index_cast %98 : i32 to index
    %100 = memref.load %arg1[%99] : memref<16xi32, #tpu.memory_space<smem>>
    %101 = arith.index_cast %100 : i32 to index
    %c0_42 = arith.constant 0 : index
    %102 = vector.load %arg2[%101, %c0_42] : memref<64x128xf32, #tpu.memory_space<vmem>>, vector<1x128xf32>
    %103 = tpu.concatenate %60, %66, %72, %78, %84, %90, %96, %102 in 0 : vector<1x128xf32>, vector<1x128xf32>, vector<1x128xf32>, vector<1x128xf32>, vector<1x128xf32>, vector<1x128xf32>, vector<1x128xf32>, vector<1x128xf32> -> vector<8x128xf32>
    %104 = arith.addf %103, %1 : vector<8x128xf32>
    %c1 = arith.constant 1 : index
    %c0_43 = arith.constant 0 : index
    %c0_44 = arith.constant 0 : index
    %105 = vector.load %arg4[%c1, %c0_43, %c0_44] : memref<2x8x128xf32, #tpu.memory_space<vmem>>, vector<1x8x128xf32>
    %106 = vector.shape_cast %105 : vector<1x8x128xf32> to vector<8x128xf32>
    %107 = vector.shape_cast %104 : vector<8x128xf32> to vector<1x8x128xf32>
    tpu.vector_store %arg4[%c1, %c0_43, %c0_44], %107 {strides = array<i32>} : memref<2x8x128xf32, #tpu.memory_space<vmem>>, vector<1x8x128xf32>,
    return
  }
  func.func @transform_0(%arg0: i32, %arg1: memref<16xi32, #tpu.memory_space<smem>>) -> (i32, i32) {
    %c0_i32 = arith.constant 0 : i32
    %c0_i32_0 = arith.constant 0 : i32
    %c0_i32_1 = arith.constant 0 : i32
    return %c0_i32, %c0_i32_0 : i32, i32
  }
  func.func @transform_1(%arg0: i32, %arg1: memref<16xi32, #tpu.memory_space<smem>>) -> (i32, i32) {
    %c0_i32 = arith.constant 0 : i32
    %c0_i32_0 = arith.constant 0 : i32
    %c0_i32_1 = arith.constant 0 : i32
    return %c0_i32, %c0_i32_0 : i32, i32
  }
  func.func @transform_2(%arg0: i32, %arg1: memref<16xi32, #tpu.memory_space<smem>>) -> (i32, i32, i32) {
    %c0_i32 = arith.constant 0 : i32
    %c0_i32_0 = arith.constant 0 : i32
    %c0_i32_1 = arith.constant 0 : i32
    return %arg0, %c0_i32, %c0_i32_0 : i32, i32, i32
  }
}

</mosaic_0001>

<llo_original>
// kernel: tpu_custom_call.1
$region0: #{tpu_custom_call.1}
  #allocation0 [shape = 'u32[]', space=smem, size = 0x4, offset = 0x4, fixed_abs, tag = 'smem constant byte address 0x4 - core index']
  #allocation1 [shape = 'u32[144,128]{1,0:T(1,128)}', space=vmem, size = 0x12000, scoped, tag = 'internal scratch']
  #allocation2 [shape = 's32[1]{0}', space=sflag, size = 0x4, scoped, tag = 'scoped memory for tpu_custom_call.1']
  #allocation3 [shape = 'u8[512]{0}', space=smem, size = 0x200, scoped, tag = 'prefetched SMEM operand 0']
  %s0 = inlined_call_operand.hbm [shape: s32[16], index: 0, kind: input, shape index: {}]
  %s1 = inlined_call_operand.hbm [shape: f32[64,128], index: 1, kind: input, shape index: {}]
  %s2 = inlined_call_operand.hbm [shape: f32[8,128], index: 2, kind: input, shape index: {}]
  %s3 = inlined_call_operand.hbm [shape: f32[2,8,128], index: 3, kind: output, shape index: {}]
  %s4 = sld [smem:[#allocation0]]
  $region26: #{tpu_custom_call.1} parent=0
    _
  %s6 = ssub.s32 1, %s4
  %s7 = scalar_select 0, %s6, %s4
  %9 = dma.hbm_to_smem %s0, 16, [#allocation3], [#allocation2]
  %10 = dma.done [#allocation2], 16
  %11 = sfence
  $region1: #{tpu_custom_call.1} parent=0
    #allocation4 [shape = 'u8[32768]{0}', space=vmem, size = 0x8000, scoped, tag = 'input window, operand 1, single buffered']
    #allocation5 [shape = 's32[1]{0}', space=sflag, size = 0x4, scoped, tag = 'scoped memory for tpu_custom_call.1']
    #allocation6 [shape = 's32[1]{0}', space=sflag, size = 0x4, scoped, tag = 'scoped memory for tpu_custom_call.1']
    #allocation7 [shape = 'u8[4096]{0}', space=vmem, size = 0x1000, scoped, tag = 'input window, operand 2, single buffered']
    #allocation8 [shape = 's32[1]{0}', space=sflag, size = 0x4, scoped, tag = 'scoped memory for tpu_custom_call.1']
    #allocation9 [shape = 'u8[8192]{0}', space=vmem, size = 0x2000, scoped, tag = 'output window, operand 0, single buffered']
    %12 = vsyncpa [#allocation5], 0
    %13 = vsyncpa [#allocation8], 0
    %14 = vsyncpa [#allocation6], 0
    // Predicated region
    $region2: #{tpu_custom_call.1} parent=1 // pred_check
      _
    $region3: #{tpu_custom_call.1} parent=1 // pred_check_branch
      %16 = sbr.rel (0) target = $region5
    $region4: #{tpu_custom_call.1} parent=1 // pred_region
      %s18 = ssub.s32 1024, 1024
      %19 = vsyncadd [#allocation5], %s18
      %s20 = sshll.u32 [#allocation4], 4
      %s21 = int_to_ptr.vmem [resolvable:$true] %s20
      %26 = dma.hbm_to_vmem [thread:$0]  %s1, 1024, %s21, [#allocation5], 128, 128, 8
    $region5: #{tpu_custom_call.1} parent=1 // pred_fallthru
      _
    // Predicated region
    $region6: #{tpu_custom_call.1} parent=1 // pred_check
      _
    $region7: #{tpu_custom_call.1} parent=1 // pred_check_branch
      %28 = sbr.rel (0) target = $region9
    $region8: #{tpu_custom_call.1} parent=1 // pred_region
      %s30 = ssub.s32 128, 128
      %31 = vsyncadd [#allocation8], %s30
      %s33 = sshll.u32 [#allocation7], 4
      %s34 = int_to_ptr.vmem [resolvable:$true] %s33
      %36 = dma.hbm_to_vmem [thread:$0]  %s2, 128, %s34, [#allocation8]
    $region9: #{tpu_custom_call.1} parent=1 // pred_fallthru
      _
    // Predicated region
    $region10: #{tpu_custom_call.1} parent=1 // pred_check
      _
    $region11: #{tpu_custom_call.1} parent=1 // pred_check_branch
      %38 = sbr.rel (0) target = $region13
    $region12: #{tpu_custom_call.1} parent=1 // pred_region
      %39 = dma.done [#allocation5], 1024
    $region13: #{tpu_custom_call.1} parent=1 // pred_fallthru
      _
    // Predicated region
    $region14: #{tpu_custom_call.1} parent=1 // pred_check
      _
    $region15: #{tpu_custom_call.1} parent=1 // pred_check_branch
      %41 = sbr.rel (0) target = $region17
    $region16: #{tpu_custom_call.1} parent=1 // pred_region
      %42 = dma.done [#allocation8], 128
    $region17: #{tpu_custom_call.1} parent=1 // pred_fallthru
      _
    %s43 = smul.u32 0, 16
    %v44 = vld [vmem:[#allocation7] sm:$0xff]
    %s45 = sld [smem:[#allocation3 + %s43]]
    %s46 = scalar_lea.vmem [#allocation4], %s45
    %v47 = vld [vmem:[%s46] sm:$0x1]
    %s48 = sadd.s32 %s43, 1
    %s49 = sld [smem:[#allocation3 + %s48]]
    %s50 = scalar_lea.vmem [#allocation4], %s49
    %v51 = vld [vmem:[%s50] sm:$0x1]
    %s52 = sadd.s32 %s43, 2
    %s53 = sld [smem:[#allocation3 + %s52]]
    %s54 = scalar_lea.vmem [#allocation4], %s53
    %v55 = vld [vmem:[%s54] sm:$0x1]
    %s56 = sadd.s32 %s43, 3
    %s57 = sld [smem:[#allocation3 + %s56]]
    %s58 = scalar_lea.vmem [#allocation4], %s57
    %v59 = vld [vmem:[%s58] sm:$0x1]
    %s60 = sadd.s32 %s43, 4
    %s61 = sld [smem:[#allocation3 + %s60]]
    %s62 = scalar_lea.vmem [#allocation4], %s61
    %v63 = vld [vmem:[%s62] sm:$0x1]
    %s64 = sadd.s32 %s43, 5
    %s65 = sld [smem:[#allocation3 + %s64]]
    %s66 = scalar_lea.vmem [#allocation4], %s65
    %v67 = vld [vmem:[%s66] sm:$0x1]
    %s68 = sadd.s32 %s43, 6
    %s69 = sld [smem:[#allocation3 + %s68]]
    %s70 = scalar_lea.vmem [#allocation4], %s69
    %v71 = vld [vmem:[%s70] sm:$0x1]
    %s72 = sadd.s32 %s43, 7
    %s73 = sld [smem:[#allocation3 + %s72]]
    %s74 = scalar_lea.vmem [#allocation4], %s73
    %v75 = vld [vmem:[%s74] sm:$0x1]
    %v77 = vrot.slane %v51, 7
    %v80 = vrot.slane %v55, 6
    %v83 = vrot.slane %v59, 5
    %v86 = vrot.slane %v63, 4
    %v89 = vrot.slane %v67, 3
    %v92 = vrot.slane %v71, 2
    %v95 = vrot.slane %v75, 1
    %vm97 = vcmask 1040384
    %v98 = vsel %vm97, %v47, %v77
    %vm99 = vcmask 1041408
    %v100 = vsel %vm99, %v98, %v80
    %vm101 = vcmask 1042432
    %v102 = vsel %vm101, %v100, %v83
    %vm103 = vcmask 1043456
    %v104 = vsel %vm103, %v102, %v86
    %vm105 = vcmask 1044480
    %v106 = vsel %vm105, %v104, %v89
    %vm107 = vcmask 1045504
    %v108 = vsel %vm107, %v106, %v92
    %vm109 = vcmask 1046528
    %v110 = vsel %vm109, %v108, %v95
    %v111 = vadd.f32 %v110, %v44
    %112 = vst [vmem:[#allocation9] sm:$0xff] %v111
    %s113 = sadd.s32 %s43, 8
    %s114 = sld [smem:[#allocation3 + %s113]]
    %s115 = scalar_lea.vmem [#allocation4], %s114
    %v116 = vld [vmem:[%s115] sm:$0x1]
    %s117 = sadd.s32 %s43, 9
    %s118 = sld [smem:[#allocation3 + %s117]]
    %s119 = scalar_lea.vmem [#allocation4], %s118
    %v120 = vld [vmem:[%s119] sm:$0x1]
    %s121 = sadd.s32 %s43, 10
    %s122 = sld [smem:[#allocation3 + %s121]]
    %s123 = scalar_lea.vmem [#allocation4], %s122
    %v124 = vld [vmem:[%s123] sm:$0x1]
    %s125 = sadd.s32 %s43, 11
    %s126 = sld [smem:[#allocation3 + %s125]]
    %s127 = scalar_lea.vmem [#allocation4], %s126
    %v128 = vld [vmem:[%s127] sm:$0x1]
    %s129 = sadd.s32 %s43, 12
    %s130 = sld [smem:[#allocation3 + %s129]]
    %s131 = scalar_lea.vmem [#allocation4], %s130
    %v132 = vld [vmem:[%s131] sm:$0x1]
    %s133 = sadd.s32 %s43, 13
    %s134 = sld [smem:[#allocation3 + %s133]]
    %s135 = scalar_lea.vmem [#allocation4], %s134
    %v136 = vld [vmem:[%s135] sm:$0x1]
    %s137 = sadd.s32 %s43, 14
    %s138 = sld [smem:[#allocation3 + %s137]]
    %s139 = scalar_lea.vmem [#allocation4], %s138
    %v140 = vld [vmem:[%s139] sm:$0x1]
    %s141 = sadd.s32 %s43, 15
    %s142 = sld [smem:[#allocation3 + %s141]]
    %s143 = scalar_lea.vmem [#allocation4], %s142
    %v144 = vld [vmem:[%s143] sm:$0x1]
    %v146 = vrot.slane %v120, 7
    %v149 = vrot.slane %v124, 6
    %v152 = vrot.slane %v128, 5
    %v155 = vrot.slane %v132, 4
    %v158 = vrot.slane %v136, 3
    %v161 = vrot.slane %v140, 2
    %v164 = vrot.slane %v144, 1
    %v166 = vsel %vm97, %v116, %v146
    %v167 = vsel %vm99, %v166, %v149
    %v168 = vsel %vm101, %v167, %v152
    %v169 = vsel %vm103, %v168, %v155
    %v170 = vsel %vm105, %v169, %v158
    %v171 = vsel %vm107, %v170, %v161
    %v172 = vsel %vm109, %v171, %v164
    %v173 = vadd.f32 %v172, %v44
    %s174 = scalar_lea.vmem [#allocation9], 8
    %175 = vst [vmem:[%s174] sm:$0xff] %v173
    // Predicated region
    $region18: #{tpu_custom_call.1} parent=1 // pred_check
      _
    $region19: #{tpu_custom_call.1} parent=1 // pred_check_branch
      %177 = sbr.rel (0) target = $region21
    $region20: #{tpu_custom_call.1} parent=1 // pred_region
      %s179 = ssub.s32 256, 256
      %180 = vsyncadd [#allocation6], %s179
      %s181 = sshll.u32 [#allocation9], 4
      %s182 = int_to_ptr.vmem [resolvable:$true] %s181
      %187 = dma.vmem_to_hbm [thread:$0]  %s182, 256, %s3, [#allocation6], 128, 128, 8
    $region21: #{tpu_custom_call.1} parent=1 // pred_fallthru
      _
    // Predicated region
    $region22: #{tpu_custom_call.1} parent=1 // pred_check
      _
    $region23: #{tpu_custom_call.1} parent=1 // pred_check_branch
      %189 = sbr.rel (0) target = $region25
    $region24: #{tpu_custom_call.1} parent=1 // pred_region
      %190 = dma.done [#allocation6], 256
    $region25: #{tpu_custom_call.1} parent=1 // pred_fallthru
      _
    %191 = vsyncpa [#allocation5], 1
    %192 = vsyncpa [#allocation8], 1
    %193 = vsyncpa [#allocation6], 1

</llo_original>
